<compile_context>
chip_gen: v7x
topology: tpu7x:2x2x1
jax: 0.10.0
libtpu: 0.0.40
codegen_flags: <defaults>
</compile_context>

<pallas_src>
import functools

import jax
import jax.numpy as jnp
from jax.experimental import pallas as pl
from jax.experimental.pallas import tpu as pltpu


def _twohead_kernel(x_ref, w1_ref, b1_ref, w2_ref, b2_ref, wh_ref, bh_ref,
                    mean_ref, var_ref, *, out_dim, matmul_dtype):
    # Weights arrive already in matmul_dtype (cast once in the wrapper, so the
    # cast is not re-executed per batch tile).  Only cast activations when a
    # reduced-precision matmul path was requested.
    if jnp.dtype(matmul_dtype) == jnp.dtype(jnp.float32):
        cast = lambda v: v
    else:
        cast = lambda v: v.astype(matmul_dtype)

    x = x_ref[...]

    # hidden layer 1: Linear + ReLU (f32 accumulation on the MXU)
    h1 = jnp.dot(cast(x), w1_ref[...],
                 preferred_element_type=jnp.float32) + b1_ref[...]
    h1 = jnp.maximum(h1, 0.0)

    # hidden layer 2: Linear + tanh
    h2 = jnp.dot(cast(h1), w2_ref[...],
                 preferred_element_type=jnp.float32) + b2_ref[...]
    h2 = jnp.tanh(h2)

    # fused heads: one matmul producing [mean || var] on 2*out_dim lanes
    hv = jnp.dot(cast(h2), wh_ref[...],
                 preferred_element_type=jnp.float32) + bh_ref[...]

    # split the lanes in-kernel and store directly into the two outputs;
    # numerically stable softplus (matches F.softplus) on the var half only.
    mean_ref[...] = hv[:, :out_dim].astype(mean_ref.dtype)
    v = hv[:, out_dim:]
    sp = jnp.log1p(jnp.exp(-jnp.abs(v))) + jnp.maximum(v, 0.0)
    var_ref[...] = sp.astype(var_ref.dtype)


def twohead_mlp_forward(x, params, *, tile_b_max=32768,
                        matmul_dtype=jnp.float32,
                        vmem_limit_bytes=48 * 1024 * 1024):
    """x: [B, input_dim] float32. params: dict with w1,b1,w2,b2,wh,bh.

    Returns (mean, var), each [B, output_dim] float32.
    """
    B, in_dim = x.shape
    h1 = params["w1"].shape[1]
    h2 = params["w2"].shape[1]
    out2 = params["wh"].shape[1]          # 2 * output_dim  (mean || var)
    out_dim = out2 // 2

    # Cast weights once in the wrapper (resident across all batch tiles);
    # biases stay f32 so the elementwise path is f32 throughout.
    w1 = params["w1"].astype(matmul_dtype)
    w2 = params["w2"].astype(matmul_dtype)
    wh = params["wh"].astype(matmul_dtype)
    b1, b2, bh = params["b1"], params["b2"], params["bh"]

    # Batch tile: multiple of 8 sublanes, capped for VMEM, and capped at
    # ceil(B/2) (rounded to 8) so two-TC chips get >= 2 grid steps to split.
    half = -(-B // 2)
    tb = min(tile_b_max, max(8, ((half + 7) // 8) * 8))
    grid = (pl.cdiv(B, tb),)              # ragged last block handled by Pallas

    resident = lambda i: (0, 0)           # weights/biases resident across tiles
    in_specs = [
        pl.BlockSpec((tb, in_dim), lambda i: (i, 0)),
        pl.BlockSpec((in_dim, h1), resident),
        pl.BlockSpec((1, h1), resident),
        pl.BlockSpec((h1, h2), resident),
        pl.BlockSpec((1, h2), resident),
        pl.BlockSpec((h2, out2), resident),
        pl.BlockSpec((1, out2), resident),
    ]
    out_specs = [
        pl.BlockSpec((tb, out_dim), lambda i: (i, 0)),
        pl.BlockSpec((tb, out_dim), lambda i: (i, 0)),
    ]
    out_shape = (
        jax.ShapeDtypeStruct((B, out_dim), jnp.float32),
        jax.ShapeDtypeStruct((B, out_dim), jnp.float32),
    )

    param_bytes = (w1.size * w1.dtype.itemsize + w2.size * w2.dtype.itemsize
                   + wh.size * wh.dtype.itemsize
                   + (b1.size + b2.size + bh.size) * 4)
    cost = pl.CostEstimate(
        flops=int(2 * B * (in_dim * h1 + h1 * h2 + h2 * out2)),
        transcendentals=int(B * (h2 + out_dim)),     # tanh + softplus exp
        bytes_accessed=int(B * in_dim * 4 + 2 * B * out_dim * 4 + param_bytes),
    )

    kernel = functools.partial(_twohead_kernel, out_dim=out_dim,
                               matmul_dtype=matmul_dtype)

    mean, var = pl.pallas_call(
        kernel,
        out_shape=out_shape,
        grid_spec=pltpu.PrefetchScalarGridSpec(
            num_scalar_prefetch=0,
            grid=grid,
            in_specs=in_specs,
            out_specs=out_specs,
        ),
        compiler_params=pltpu.CompilerParams(
            dimension_semantics=("parallel",),
            vmem_limit_bytes=vmem_limit_bytes,
        ),
        cost_estimate=cost,
    )(x, w1, b1, w2, b2, wh, bh)

    return mean, var


def _xavier_uniform(key, fan_in, fan_out):
    bound = jnp.sqrt(6.0 / (fan_in + fan_out))
    # Stored as [in, out] (transposed vs PyTorch's [out, in]) for x @ W.
    return jax.random.uniform(key, (fan_in, fan_out), jnp.float32, -bound, bound)


def _bias_init(key, fan_in, fan_out):
    # Matches PyTorch nn.Linear default bias init: U(-1/sqrt(fan_in), 1/sqrt(fan_in)).
    bound = 1.0 / jnp.sqrt(jnp.float32(fan_in))
    return jax.random.uniform(key, (1, fan_out), jnp.float32, -bound, bound)


def init_params(key, input_dim, hidden_dims, output_dim):
    ks = jax.random.split(key, 8)
    h1, h2 = hidden_dims
    wm = _xavier_uniform(ks[4], h2, output_dim)
    bm = _bias_init(ks[5], h2, output_dim)
    wv = _xavier_uniform(ks[6], h2, output_dim)
    bv = _bias_init(ks[7], h2, output_dim)
    return {
        "w1": _xavier_uniform(ks[0], input_dim, h1),
        "b1": _bias_init(ks[1], input_dim, h1),
        "w2": _xavier_uniform(ks[2], h1, h2),
        "b2": _bias_init(ks[3], h1, h2),
        # heads packed side-by-side: one [h2, 2*out] matmul, lane-split in-kernel
        "wh": jnp.concatenate([wm, wv], axis=1),
        "bh": jnp.concatenate([bm, bv], axis=1),
    }


def reference_forward(x, p):
    h = jnp.maximum(x @ p["w1"] + p["b1"], 0.0)
    h = jnp.tanh(h @ p["w2"] + p["b2"])
    hv = h @ p["wh"] + p["bh"]
    out = p["wh"].shape[1] // 2
    return hv[:, :out], jax.nn.softplus(hv[:, out:])


if __name__ == "__main__":
    key = jax.random.PRNGKey(0)
    kx, kp = jax.random.split(key)

    # batch=10 deliberately not a multiple of the 8-row tile so the ragged
    # last-block (masked) path introduced by dropping jnp.pad is exercised.
    batch, input_dim, hidden_dims, output_dim = 10, 16, (32, 32), 8
    x = jax.random.normal(kx, (batch, input_dim), jnp.float32)
    params = init_params(kp, input_dim, hidden_dims, output_dim)

    mean, var = jax.block_until_ready(twohead_mlp_forward(x, params))

    # sanity check against plain-JAX f32 reference (tolerance covers MXU rounding)
    ref_mean, ref_var = reference_forward(x, params)
    assert mean.shape == (batch, output_dim) and var.shape == (batch, output_dim)
    assert jnp.allclose(mean, ref_mean, atol=2e-2, rtol=2e-2)
    assert jnp.allclose(var, ref_var, atol=2e-2, rtol=2e-2)
    assert bool(jnp.all(var >= 0.0))
    assert bool(jnp.all(jnp.isfinite(mean))) and bool(jnp.all(jnp.isfinite(var)))

    print("KERNEL_OK")
</pallas_src>

<mosaic_0001>
module attributes {stable_mosaic.version = 11 : i64} {
  func.func @_twohead_kernel(%arg0: i32, %arg1: memref<8x16xf32, #tpu.memory_space<vmem>>, %arg2: memref<16x32xf32, #tpu.memory_space<vmem>>, %arg3: memref<1x32xf32, #tpu.memory_space<vmem>>, %arg4: memref<32x32xf32, #tpu.memory_space<vmem>>, %arg5: memref<1x32xf32, #tpu.memory_space<vmem>>, %arg6: memref<32x16xf32, #tpu.memory_space<vmem>>, %arg7: memref<1x16xf32, #tpu.memory_space<vmem>>, %arg8: memref<8x8xf32, #tpu.memory_space<vmem>>, %arg9: memref<8x8xf32, #tpu.memory_space<vmem>>) attributes {dimension_semantics = [#tpu.dimension_semantics<parallel>], iteration_bounds = array<i64: 2>, scalar_prefetch = 0 : i64, scratch_operands = 0 : i64, tpu.core_type = #tpu.core_type<tc>, window_params = [{transform_indices = @transform_0, window_bounds = array<i64: 8, 16>}, {pipeline_mode = #tpu.pipeline_mode<synchronous>, transform_indices = @transform_1, window_bounds = array<i64: 16, 32>}, {pipeline_mode = #tpu.pipeline_mode<synchronous>, transform_indices = @transform_2, window_bounds = array<i64: 1, 32>}, {pipeline_mode = #tpu.pipeline_mode<synchronous>, transform_indices = @transform_3, window_bounds = array<i64: 32, 32>}, {pipeline_mode = #tpu.pipeline_mode<synchronous>, transform_indices = @transform_4, window_bounds = array<i64: 1, 32>}, {pipeline_mode = #tpu.pipeline_mode<synchronous>, transform_indices = @transform_5, window_bounds = array<i64: 32, 16>}, {pipeline_mode = #tpu.pipeline_mode<synchronous>, transform_indices = @transform_6, window_bounds = array<i64: 1, 16>}, {transform_indices = @transform_7, window_bounds = array<i64: 8, 8>}, {transform_indices = @transform_8, window_bounds = array<i64: 8, 8>}]} {
    %c0 = arith.constant 0 : index
    %c0_0 = arith.constant 0 : index
    %0 = vector.load %arg1[%c0, %c0_0] : memref<8x16xf32, #tpu.memory_space<vmem>>, vector<8x16xf32>
    %c0_1 = arith.constant 0 : index
    %c0_2 = arith.constant 0 : index
    %1 = vector.load %arg2[%c0_1, %c0_2] : memref<16x32xf32, #tpu.memory_space<vmem>>, vector<16x32xf32>
    %cst = arith.constant dense<0.000000e+00> : vector<8x32xf32>
    %2 = tpu.matmul %0, %1, %cst {dimension_numbers = #tpu.dot_dimension_numbers<[1], [0], [0], [1], [0, 0, 1, 1], [], []>} : vector<8x16xf32>, vector<16x32xf32>, vector<8x32xf32> -> vector<8x32xf32>
    %c0_3 = arith.constant 0 : index
    %c0_4 = arith.constant 0 : index
    %3 = vector.load %arg3[%c0_3, %c0_4] : memref<1x32xf32, #tpu.memory_space<vmem>>, vector<1x32xf32>
    %4 = vector.broadcast %3 : vector<1x32xf32> to vector<8x32xf32>
    %5 = arith.addf %2, %4 : vector<8x32xf32>
    %cst_5 = arith.constant 0.000000e+00 : f32
    %6 = vector.broadcast %cst_5 : f32 to vector<8x32xf32>
    %7 = arith.maximumf %5, %6 : vector<8x32xf32>
    %c0_6 = arith.constant 0 : index
    %c0_7 = arith.constant 0 : index
    %8 = vector.load %arg4[%c0_6, %c0_7] : memref<32x32xf32, #tpu.memory_space<vmem>>, vector<32x32xf32>
    %cst_8 = arith.constant dense<0.000000e+00> : vector<8x32xf32>
    %9 = tpu.matmul %7, %8, %cst_8 {dimension_numbers = #tpu.dot_dimension_numbers<[1], [0], [0], [1], [0, 0, 1, 1], [], []>} : vector<8x32xf32>, vector<32x32xf32>, vector<8x32xf32> -> vector<8x32xf32>
    %c0_9 = arith.constant 0 : index
    %c0_10 = arith.constant 0 : index
    %10 = vector.load %arg5[%c0_9, %c0_10] : memref<1x32xf32, #tpu.memory_space<vmem>>, vector<1x32xf32>
    %11 = vector.broadcast %10 : vector<1x32xf32> to vector<8x32xf32>
    %12 = arith.addf %9, %11 : vector<8x32xf32>
    %13 = math.tanh %12 : vector<8x32xf32>
    %c0_11 = arith.constant 0 : index
    %c0_12 = arith.constant 0 : index
    %14 = vector.load %arg6[%c0_11, %c0_12] : memref<32x16xf32, #tpu.memory_space<vmem>>, vector<32x16xf32>
    %cst_13 = arith.constant dense<0.000000e+00> : vector<8x16xf32>
    %15 = tpu.matmul %13, %14, %cst_13 {dimension_numbers = #tpu.dot_dimension_numbers<[1], [0], [0], [1], [0, 0, 1, 1], [], []>} : vector<8x32xf32>, vector<32x16xf32>, vector<8x16xf32> -> vector<8x16xf32>
    %c0_14 = arith.constant 0 : index
    %c0_15 = arith.constant 0 : index
    %16 = vector.load %arg7[%c0_14, %c0_15] : memref<1x16xf32, #tpu.memory_space<vmem>>, vector<1x16xf32>
    %17 = vector.broadcast %16 : vector<1x16xf32> to vector<8x16xf32>
    %18 = arith.addf %15, %17 : vector<8x16xf32>
    %19 = vector.extract_strided_slice %18 {offsets = [0, 0], sizes = [8, 8], strides = [1, 1]} : vector<8x16xf32> to vector<8x8xf32>
    %c0_16 = arith.constant 0 : index
    %c0_17 = arith.constant 0 : index
    %20 = vector.load %arg8[%c0_16, %c0_17] : memref<8x8xf32, #tpu.memory_space<vmem>>, vector<8x8xf32>
    tpu.vector_store %arg8[%c0_16, %c0_17], %19 {strides = array<i32>} : memref<8x8xf32, #tpu.memory_space<vmem>>, vector<8x8xf32>,
    %21 = vector.extract_strided_slice %18 {offsets = [0, 8], sizes = [8, 8], strides = [1, 1]} : vector<8x16xf32> to vector<8x8xf32>
    %22 = math.absf %21 : vector<8x8xf32>
    %cst_18 = arith.constant 0.000000e+00 : f32
    %23 = vector.broadcast %cst_18 : f32 to vector<8x8xf32>
    %24 = arith.subf %23, %22 : vector<8x8xf32>
    %25 = math.exp %24 : vector<8x8xf32>
    %26 = math.log1p %25 : vector<8x8xf32>
    %cst_19 = arith.constant 0.000000e+00 : f32
    %27 = vector.broadcast %cst_19 : f32 to vector<8x8xf32>
    %28 = arith.maximumf %21, %27 : vector<8x8xf32>
    %29 = arith.addf %26, %28 : vector<8x8xf32>
    %c0_20 = arith.constant 0 : index
    %c0_21 = arith.constant 0 : index
    %30 = vector.load %arg9[%c0_20, %c0_21] : memref<8x8xf32, #tpu.memory_space<vmem>>, vector<8x8xf32>
    tpu.vector_store %arg9[%c0_20, %c0_21], %29 {strides = array<i32>} : memref<8x8xf32, #tpu.memory_space<vmem>>, vector<8x8xf32>,
    return
  }
  func.func @transform_0(%arg0: i32) -> (i32, i32) {
    %c0_i32 = arith.constant 0 : i32
    %c0_i32_0 = arith.constant 0 : i32
    return %arg0, %c0_i32 : i32, i32
  }
  func.func @transform_1(%arg0: i32) -> (i32, i32) {
    %c0_i32 = arith.constant 0 : i32
    %c0_i32_0 = arith.constant 0 : i32
    %c0_i32_1 = arith.constant 0 : i32
    return %c0_i32, %c0_i32_0 : i32, i32
  }
  func.func @transform_2(%arg0: i32) -> (i32, i32) {
    %c0_i32 = arith.constant 0 : i32
    %c0_i32_0 = arith.constant 0 : i32
    %c0_i32_1 = arith.constant 0 : i32
    return %c0_i32, %c0_i32_0 : i32, i32
  }
  func.func @transform_3(%arg0: i32) -> (i32, i32) {
    %c0_i32 = arith.constant 0 : i32
    %c0_i32_0 = arith.constant 0 : i32
    %c0_i32_1 = arith.constant 0 : i32
    return %c0_i32, %c0_i32_0 : i32, i32
  }
  func.func @transform_4(%arg0: i32) -> (i32, i32) {
    %c0_i32 = arith.constant 0 : i32
    %c0_i32_0 = arith.constant 0 : i32
    %c0_i32_1 = arith.constant 0 : i32
    return %c0_i32, %c0_i32_0 : i32, i32
  }
  func.func @transform_5(%arg0: i32) -> (i32, i32) {
    %c0_i32 = arith.constant 0 : i32
    %c0_i32_0 = arith.constant 0 : i32
    %c0_i32_1 = arith.constant 0 : i32
    return %c0_i32, %c0_i32_0 : i32, i32
  }
  func.func @transform_6(%arg0: i32) -> (i32, i32) {
    %c0_i32 = arith.constant 0 : i32
    %c0_i32_0 = arith.constant 0 : i32
    %c0_i32_1 = arith.constant 0 : i32
    return %c0_i32, %c0_i32_0 : i32, i32
  }
  func.func @transform_7(%arg0: i32) -> (i32, i32) {
    %c0_i32 = arith.constant 0 : i32
    %c0_i32_0 = arith.constant 0 : i32
    return %arg0, %c0_i32 : i32, i32
  }
  func.func @transform_8(%arg0: i32) -> (i32, i32) {
    %c0_i32 = arith.constant 0 : i32
    %c0_i32_0 = arith.constant 0 : i32
    return %arg0, %c0_i32 : i32, i32
  }
}

</mosaic_0001>

<llo_original>
// kernel: tpu_custom_call.1
$region0: #{tpu_custom_call.1}
  #allocation0 [shape = 'u32[]', space=smem, size = 0x4, offset = 0x4, fixed_abs, tag = 'smem constant byte address 0x4 - core index']
  #allocation1 [shape = 'u32[144,128]{1,0:T(1,128)}', space=vmem, size = 0x12000, scoped, tag = 'internal scratch']
  %s0 = inlined_call_operand.vmem [shape: f32[10,16], index: 0, kind: input, shape index: {}]
  %s1 = inlined_call_operand.hbm [shape: f32[16,32], index: 1, kind: input, shape index: {}]
  %s2 = inlined_call_operand.vmem [shape: f32[1,32], index: 2, kind: input, shape index: {}]
  %s3 = inlined_call_operand.vmem [shape: f32[32,32], index: 3, kind: input, shape index: {}]
  %s4 = inlined_call_operand.vmem [shape: f32[1,32], index: 4, kind: input, shape index: {}]
  %s5 = inlined_call_operand.vmem [shape: f32[32,16], index: 5, kind: input, shape index: {}]
  %s6 = inlined_call_operand.vmem [shape: f32[1,16], index: 6, kind: input, shape index: {}]
  %s7 = inlined_call_operand.vmem [shape: f32[10,8], index: 7, kind: output, shape index: {0}]
  %s8 = inlined_call_operand.vmem [shape: f32[10,8], index: 8, kind: output, shape index: {1}]
  %9 = xla_tuple %s7, %s8
  %s10 = sld [smem:[#allocation0]]
  $region73: #{tpu_custom_call.1} parent=0
    _
  %s12 = ssub.s32 1, %s10
  %s13 = scalar_select 0, %s12, %s10
  $region1: #{tpu_custom_call.1} parent=0
    #allocation2 [shape = 'u8[8192]{0}', space=vmem, size = 0x2000, scoped, tag = 'input window, operand 1, single buffered']
    #allocation3 [shape = 's32[2]{0}', space=sflag, size = 0x8, scoped, tag = 'scoped memory for tpu_custom_call.1']
    %14 = vsyncpa [#allocation3], 0
    loop: start=0, step=1, limit=4
    $region2: #{tpu_custom_call.1} parent=1 // loop_pre_header
      _
    $region3: #{tpu_custom_call.1} parent=1 // loop_header
      %s16 = sphi 0, %s20
      %p17 = scmp.ge.s32.totalorder %s16, 4
      %s26 = sphi 0, %s28
      %s29 = sphi 0, %s26
      %s30 = sphi 0, %s29
      %s46 = sphi 0, %s30
      %s50 = sphi 0, %s50
      %s52 = sphi 0, %s50
      %s53 = sphi 0, %s52
      %s67 = sphi 0, %s53
      %s71 = sphi 0, %s71
      %s73 = sphi 0, %s71
      %s74 = sphi 0, %s73
      %s88 = sphi 0, %s74
      %s92 = sphi 0, %s92
      %s94 = sphi 0, %s92
      %s95 = sphi 0, %s94
      %s109 = sphi 0, %s95
      %s113 = sphi 0, %s113
      %s115 = sphi 0, %s113
      %s116 = sphi 0, %s115
      %s130 = sphi 0, %s116
      %s134 = sphi 0, %s134
      %s136 = sphi 0, %s134
      %s137 = sphi 0, %s136
      %s151 = sphi 0, %s137
      %s155 = sphi 0, %s155
      %s157 = sphi 0, %s155
      %s158 = sphi 0, %s157
      %s172 = sphi 0, %s158
      %s178 = sphi 0, %s180
      %s181 = sphi 0, %s178
      %s182 = sphi 0, %s181
      %s198 = sphi 0, %s182
      %s204 = sphi 0, %s206
      %s207 = sphi 0, %s204
      %s208 = sphi 0, %s207
      %s224 = sphi 0, %s208
    $region4: #{tpu_custom_call.1} parent=1 // loop_header_branch
      %19 = sbr.rel (%p17) target = $region8
    $region5: #{tpu_custom_call.1} parent=1 // loop_body
      %s21 = ssub.s32 %s16, 1
      %s22 = ssub.s32 %s16, 2
      %s23 = sadd.s32 %s16, 1
      %s24 = ssub.s32 %s16, %s23
      %p25 = scmp.eq.s32.totalorder %s24, 0
      %s27 = sadd.s32 %s26, 1
      %s28 = scalar_select %p25, %s26, %s27
      %p31 = pneg %p25
      %p32 = scmp.eq.s32.totalorder %s16, 1
      %p33 = por %p31, %p32
      %p34 = scmp.ne.s32.totalorder %s26, %s29
      %p35 = scmp.eq.s32.totalorder %s16, 0
      %p36 = por %p34, %p35
      %p37 = scmp.ne.s32.totalorder %s26, %s29
      %p38 = scmp.eq.s32.totalorder %s21, 1
      %p39 = por %p37, %p38
      %p40 = scmp.ne.s32.totalorder %s29, %s30
      %p41 = scmp.eq.s32.totalorder %s21, 0
      %p42 = por %p40, %p41
      %p43 = scmp.ne.s32.totalorder %s29, %s30
      %p44 = scmp.eq.s32.totalorder %s22, 1
      %p45 = por %p43, %p44
      %p47 = scmp.ne.s32.totalorder %s30, %s46
      %p48 = scmp.eq.s32.totalorder %s22, 0
      %p49 = por %p47, %p48
      %s51 = sadd.s32 %s50, 1
      %p54 = scmp.eq.s32.totalorder %s16, 1
      %p55 = scmp.ne.s32.totalorder %s50, %s52
      %p56 = scmp.eq.s32.totalorder %s16, 0
      %p57 = por %p55, %p56
      %p58 = scmp.ne.s32.totalorder %s50, %s52
      %p59 = scmp.eq.s32.totalorder %s21, 1
      %p60 = por %p58, %p59
      %p61 = scmp.ne.s32.totalorder %s52, %s53
      %p62 = scmp.eq.s32.totalorder %s21, 0
      %p63 = por %p61, %p62
      %p64 = scmp.ne.s32.totalorder %s52, %s53
      %p65 = scmp.eq.s32.totalorder %s22, 1
      %p66 = por %p64, %p65
      %p68 = scmp.ne.s32.totalorder %s53, %s67
      %p69 = scmp.eq.s32.totalorder %s22, 0
      %p70 = por %p68, %p69
      %s72 = sadd.s32 %s71, 1
      %p75 = scmp.eq.s32.totalorder %s16, 1
      %p76 = scmp.ne.s32.totalorder %s71, %s73
      %p77 = scmp.eq.s32.totalorder %s16, 0
      %p78 = por %p76, %p77
      %p79 = scmp.ne.s32.totalorder %s71, %s73
      %p80 = scmp.eq.s32.totalorder %s21, 1
      %p81 = por %p79, %p80
      %p82 = scmp.ne.s32.totalorder %s73, %s74
      %p83 = scmp.eq.s32.totalorder %s21, 0
      %p84 = por %p82, %p83
      %p85 = scmp.ne.s32.totalorder %s73, %s74
      %p86 = scmp.eq.s32.totalorder %s22, 1
      %p87 = por %p85, %p86
      %p89 = scmp.ne.s32.totalorder %s74, %s88
      %p90 = scmp.eq.s32.totalorder %s22, 0
      %p91 = por %p89, %p90
      %s93 = sadd.s32 %s92, 1
      %p96 = scmp.eq.s32.totalorder %s16, 1
      %p97 = scmp.ne.s32.totalorder %s92, %s94
      %p98 = scmp.eq.s32.totalorder %s16, 0
      %p99 = por %p97, %p98
      %p100 = scmp.ne.s32.totalorder %s92, %s94
      %p101 = scmp.eq.s32.totalorder %s21, 1
      %p102 = por %p100, %p101
      %p103 = scmp.ne.s32.totalorder %s94, %s95
      %p104 = scmp.eq.s32.totalorder %s21, 0
      %p105 = por %p103, %p104
      %p106 = scmp.ne.s32.totalorder %s94, %s95
      %p107 = scmp.eq.s32.totalorder %s22, 1
      %p108 = por %p106, %p107
      %p110 = scmp.ne.s32.totalorder %s95, %s109
      %p111 = scmp.eq.s32.totalorder %s22, 0
      %p112 = por %p110, %p111
      %s114 = sadd.s32 %s113, 1
      %p117 = scmp.eq.s32.totalorder %s16, 1
      %p118 = scmp.ne.s32.totalorder %s113, %s115
      %p119 = scmp.eq.s32.totalorder %s16, 0
      %p120 = por %p118, %p119
      %p121 = scmp.ne.s32.totalorder %s113, %s115
      %p122 = scmp.eq.s32.totalorder %s21, 1
      %p123 = por %p121, %p122
      %p124 = scmp.ne.s32.totalorder %s115, %s116
      %p125 = scmp.eq.s32.totalorder %s21, 0
      %p126 = por %p124, %p125
      %p127 = scmp.ne.s32.totalorder %s115, %s116
      %p128 = scmp.eq.s32.totalorder %s22, 1
      %p129 = por %p127, %p128
      %p131 = scmp.ne.s32.totalorder %s116, %s130
      %p132 = scmp.eq.s32.totalorder %s22, 0
      %p133 = por %p131, %p132
      %s135 = sadd.s32 %s134, 1
      %p138 = scmp.eq.s32.totalorder %s16, 1
      %p139 = scmp.ne.s32.totalorder %s134, %s136
      %p140 = scmp.eq.s32.totalorder %s16, 0
      %p141 = por %p139, %p140
      %p142 = scmp.ne.s32.totalorder %s134, %s136
      %p143 = scmp.eq.s32.totalorder %s21, 1
      %p144 = por %p142, %p143
      %p145 = scmp.ne.s32.totalorder %s136, %s137
      %p146 = scmp.eq.s32.totalorder %s21, 0
      %p147 = por %p145, %p146
      %p148 = scmp.ne.s32.totalorder %s136, %s137
      %p149 = scmp.eq.s32.totalorder %s22, 1
      %p150 = por %p148, %p149
      %p152 = scmp.ne.s32.totalorder %s137, %s151
      %p153 = scmp.eq.s32.totalorder %s22, 0
      %p154 = por %p152, %p153
      %s156 = sadd.s32 %s155, 1
      %p159 = scmp.eq.s32.totalorder %s16, 1
      %p160 = scmp.ne.s32.totalorder %s155, %s157
      %p161 = scmp.eq.s32.totalorder %s16, 0
      %p162 = por %p160, %p161
      %p163 = scmp.ne.s32.totalorder %s155, %s157
      %p164 = scmp.eq.s32.totalorder %s21, 1
      %p165 = por %p163, %p164
      %p166 = scmp.ne.s32.totalorder %s157, %s158
      %p167 = scmp.eq.s32.totalorder %s21, 0
      %p168 = por %p166, %p167
      %p169 = scmp.ne.s32.totalorder %s157, %s158
      %p170 = scmp.eq.s32.totalorder %s22, 1
      %p171 = por %p169, %p170
      %p173 = scmp.ne.s32.totalorder %s158, %s172
      %p174 = scmp.eq.s32.totalorder %s22, 0
      %p175 = por %p173, %p174
      %s176 = ssub.s32 %s16, %s23
      %p177 = scmp.eq.s32.totalorder %s176, 0
      %s179 = sadd.s32 %s178, 1
      %s180 = scalar_select %p177, %s178, %s179
      %p183 = pneg %p177
      %p184 = scmp.eq.s32.totalorder %s16, 1
      %p185 = por %p183, %p184
      %p186 = scmp.ne.s32.totalorder %s178, %s181
      %p187 = scmp.eq.s32.totalorder %s16, 0
      %p188 = por %p186, %p187
      %p189 = scmp.ne.s32.totalorder %s178, %s181
      %p190 = scmp.eq.s32.totalorder %s21, 1
      %p191 = por %p189, %p190
      %p192 = scmp.ne.s32.totalorder %s181, %s182
      %p193 = scmp.eq.s32.totalorder %s21, 0
      %p194 = por %p192, %p193
      %p195 = scmp.ne.s32.totalorder %s181, %s182
      %p196 = scmp.eq.s32.totalorder %s22, 1
      %p197 = por %p195, %p196
      %p199 = scmp.ne.s32.totalorder %s182, %s198
      %p200 = scmp.eq.s32.totalorder %s22, 0
      %p201 = por %p199, %p200
      %s202 = ssub.s32 %s16, %s23
      %p203 = scmp.eq.s32.totalorder %s202, 0
      %s205 = sadd.s32 %s204, 1
      %s206 = scalar_select %p203, %s204, %s205
      %p209 = pneg %p203
      %p210 = scmp.eq.s32.totalorder %s16, 1
      %p211 = por %p209, %p210
      %p212 = scmp.ne.s32.totalorder %s204, %s207
      %p213 = scmp.eq.s32.totalorder %s16, 0
      %p214 = por %p212, %p213
      %p215 = scmp.ne.s32.totalorder %s204, %s207
      %p216 = scmp.eq.s32.totalorder %s21, 1
      %p217 = por %p215, %p216
      %p218 = scmp.ne.s32.totalorder %s207, %s208
      %p219 = scmp.eq.s32.totalorder %s21, 0
      %p220 = por %p218, %p219
      %p221 = scmp.ne.s32.totalorder %s207, %s208
      %p222 = scmp.eq.s32.totalorder %s22, 1
      %p223 = por %p221, %p222
      %p225 = scmp.ne.s32.totalorder %s208, %s224
      %p226 = scmp.eq.s32.totalorder %s22, 0
      %p227 = por %p225, %p226
      %p228 = scmp.le.s32.totalorder 1, %s16
      %p229 = scmp.lt.s32.totalorder %s16, 3
      %p230 = pnand %p228, %p229
      %p231 = pneg %p230
      // Predicated region
      $region9: #{tpu_custom_call.1} parent=5 // pred_check
        _
      $region10: #{tpu_custom_call.1} parent=5 // pred_check_branch
        %233 = sbr.rel (%p230) target = $region12
      $region11: #{tpu_custom_call.1} parent=5 // pred_region
        %s234 = ssub.s32 %s16, 1
        // Predicated region
        $region13: #{tpu_custom_call.1} parent=11 // pred_check
          %p235 = pneg %p63
        $region14: #{tpu_custom_call.1} parent=11 // pred_check_branch
          %237 = sbr.rel (%p235) target = $region16
        $region15: #{tpu_custom_call.1} parent=11 // pred_region
          %s239 = ssub.s32 256, 256
          %240 = vsyncadd [#allocation3], %s239
          %s241 = sshll.u32 [#allocation2], 4
          %s242 = int_to_ptr.vmem [resolvable:$true] %s241
          %247 = dma.hbm_to_vmem [thread:$0]  %s1, 256, %s242, [#allocation3], 128, 128, 8
        $region16: #{tpu_custom_call.1} parent=11 // pred_fallthru
          _
        // Predicated region
        $region17: #{tpu_custom_call.1} parent=11 // pred_check
          %p248 = pneg %p84
        $region18: #{tpu_custom_call.1} parent=11 // pred_check_branch
          %250 = sbr.rel (%p248) target = $region20
        $region19: #{tpu_custom_call.1} parent=11 // pred_region
          _
        $region20: #{tpu_custom_call.1} parent=11 // pred_fallthru
          _
        // Predicated region
        $region21: #{tpu_custom_call.1} parent=11 // pred_check
          %p251 = pneg %p105
        $region22: #{tpu_custom_call.1} parent=11 // pred_check_branch
          %253 = sbr.rel (%p251) target = $region24
        $region23: #{tpu_custom_call.1} parent=11 // pred_region
          _
        $region24: #{tpu_custom_call.1} parent=11 // pred_fallthru
          _
        // Predicated region
        $region25: #{tpu_custom_call.1} parent=11 // pred_check
          %p254 = pneg %p126
        $region26: #{tpu_custom_call.1} parent=11 // pred_check_branch
          %256 = sbr.rel (%p254) target = $region28
        $region27: #{tpu_custom_call.1} parent=11 // pred_region
          _
        $region28: #{tpu_custom_call.1} parent=11 // pred_fallthru
          _
        // Predicated region
        $region29: #{tpu_custom_call.1} parent=11 // pred_check
          %p257 = pneg %p147
        $region30: #{tpu_custom_call.1} parent=11 // pred_check_branch
          %259 = sbr.rel (%p257) target = $region32
        $region31: #{tpu_custom_call.1} parent=11 // pred_region
          _
        $region32: #{tpu_custom_call.1} parent=11 // pred_fallthru
          _
        // Predicated region
        $region33: #{tpu_custom_call.1} parent=11 // pred_check
          %p260 = pneg %p168
        $region34: #{tpu_custom_call.1} parent=11 // pred_check_branch
          %262 = sbr.rel (%p260) target = $region36
        $region35: #{tpu_custom_call.1} parent=11 // pred_region
          _
        $region36: #{tpu_custom_call.1} parent=11 // pred_fallthru
          _
      $region12: #{tpu_custom_call.1} parent=5 // pred_fallthru
        _
      %p263 = scmp.lt.s32.totalorder %s16, 2
      // Predicated region
      $region37: #{tpu_custom_call.1} parent=5 // pred_check
        %p264 = pneg %p263
      $region38: #{tpu_custom_call.1} parent=5 // pred_check_branch
        %266 = sbr.rel (%p264) target = $region40
      $region39: #{tpu_custom_call.1} parent=5 // pred_region
        // Predicated region
        $region41: #{tpu_custom_call.1} parent=39 // pred_check
          %p267 = pneg %p36
        $region42: #{tpu_custom_call.1} parent=39 // pred_check_branch
          %269 = sbr.rel (%p267) target = $region44
        $region43: #{tpu_custom_call.1} parent=39 // pred_region
          %p270 = scmp.lt.s32.totalorder %s16, 1
          %s271 = scalar_select %p270, %s16, 1
          %s272 = smul.addr %s271, 8
          %s273 = scalar_lea.vmem %s0, %s272
        $region44: #{tpu_custom_call.1} parent=39 // pred_fallthru
          _
      $region40: #{tpu_custom_call.1} parent=5 // pred_fallthru
        _
      %p274 = scmp.le.s32.totalorder 1, %s16
      %p275 = scmp.lt.s32.totalorder %s16, 3
      %p276 = pnand %p274, %p275
      %p277 = pneg %p276
      // Predicated region
      $region45: #{tpu_custom_call.1} parent=5 // pred_check
        _
      $region46: #{tpu_custom_call.1} parent=5 // pred_check_branch
        %279 = sbr.rel (%p276) target = $region48
      $region47: #{tpu_custom_call.1} parent=5 // pred_region
        %s280 = ssub.s32 %s16, 1
        // Predicated region
        $region49: #{tpu_custom_call.1} parent=47 // pred_check
          %p281 = pneg %p63
        $region50: #{tpu_custom_call.1} parent=47 // pred_check_branch
          %283 = sbr.rel (%p281) target = $region52
        $region51: #{tpu_custom_call.1} parent=47 // pred_region
          %284 = dma.done [#allocation3], 256
        $region52: #{tpu_custom_call.1} parent=47 // pred_fallthru
          _
        %p285 = scmp.lt.s32.totalorder %s21, 1
        %s286 = scalar_select %p285, %s21, 1
        %s287 = smul.addr %s286, 8
        %s288 = scalar_lea.vmem %s0, %s287
        %p289 = pneg %p42
        %p290 = pneg %p39
        %p291 = pneg %p63
        %p292 = pneg %p60
        %p293 = pneg %p84
        %p294 = pneg %p81
        %p295 = pneg %p105
        %p296 = pneg %p102
        %p297 = pneg %p126
        %p298 = pneg %p123
        %p299 = pneg %p147
        %p300 = pneg %p144
        %p301 = pneg %p168
        %p302 = pneg %p165
        %p303 = pneg %p194
        %p304 = pneg %p191
        %p305 = scmp.lt.s32.totalorder %s21, 1
        %s306 = scalar_select %p305, %s21, 1
        %s307 = smul.addr %s306, 8
        %s308 = scalar_lea.vmem %s7, %s307
        %p309 = pneg %p220
        %p310 = pneg %p217
        %p311 = scmp.lt.s32.totalorder %s21, 1
        %s312 = scalar_select %p311, %s21, 1
        %s313 = smul.addr %s312, 8
        %s314 = scalar_lea.vmem %s8, %s313
        %p315 = scmp.lt.s32.totalorder %s21, 1
        %s316 = scalar_select %p315, %s21, 1
        %s317 = smul.addr %s316, 8
        %s318 = scalar_lea.vmem %s0, %s317
        %p319 = scmp.lt.s32.totalorder %s21, 1
        %s320 = scalar_select %p319, %s21, 1
        %s321 = smul.addr %s320, 8
        %s322 = scalar_lea.vmem %s7, %s321
        %p323 = scmp.lt.s32.totalorder %s21, 1
        %s324 = scalar_select %p323, %s21, 1
        %s325 = smul.addr %s324, 8
        %s326 = scalar_lea.vmem %s8, %s325
        %v327 = vld [vmem:[%s318] sm:$0xff]
        %v328 = vld [vmem:[#allocation2] sm:$0xff]
        %v329 = vld [vmem:[#allocation2 + $0x8] sm:$0xff]
        %v330 = vld [vmem:[%s2] sm:$0x1]
        %v332 = vlaneseq
        %v333 = vshrl.u32 %v332, 7
        %v334 = vsub.s32 0, %v333
        %v335 = vrot.slane %v330, %v334
        %vm337 = vcmask 130048
        %v339 = vsel %vm337, %v327, 0
        %341 = vmatprep.subr.mxu0 0.0
        %342 = vmatpush1.msra.mxu0 %v328
        %343 = vmatprep.subr.mxu0 0.0
        %344 = vmatpush1.msra.mxu0 %v329
        %345 = vmatprep.subr.mxu0 0.0
        %346 = vmatpush1.msra.mxu0 0.0
        %347 = vmatprep.subr.mxu0 0.0
        %348 = vmatpush1.msra.mxu0 0.0
        %349 = vmatprep.subr.mxu0 0.0
        %350 = vmatpush1.msra.mxu0 0.0
        %351 = vmatprep.subr.mxu0 0.0
        %352 = vmatpush1.msra.mxu0 0.0
        %353 = vmatprep.subr.mxu0 0.0
        %354 = vmatpush1.msra.mxu0 0.0
        %355 = vmatprep.subr.mxu0 0.0
        %356 = vmatpush1.msra.mxu0 0.0
        %357 = vmatprep.subr.mxu0 0.0
        %358 = vmatpush1.msra.mxu0 0.0
        %359 = vmatprep.subr.mxu0 0.0
        %360 = vmatpush1.msra.mxu0 0.0
        %361 = vmatprep.subr.mxu0 0.0
        %362 = vmatpush1.msra.mxu0 0.0
        %363 = vmatprep.subr.mxu0 0.0
        %364 = vmatpush1.msra.mxu0 0.0
        %365 = vmatprep.subr.mxu0 0.0
        %366 = vmatpush1.msra.mxu0 0.0
        %367 = vmatprep.subr.mxu0 0.0
        %368 = vmatpush1.msra.mxu0 0.0
        %369 = vmatprep.subr.mxu0 0.0
        %370 = vmatpush1.msra.mxu0 0.0
        %371 = vmatprep.subr.mxu0 0.0
        %372 = vmatpush1.msra.mxu0 0.0
        %373 = vmatprep.subr.mxu0 0.0
        %374 = vmatpush1.msra.mxu0 0.0
        %375 = vmatprep.subr.mxu0 0.0
        %376 = vmatpush1.msra.mxu0 0.0
        %377 = vmatprep.subr.mxu0 0.0
        %378 = vmatpush1.msra.mxu0 0.0
        %379 = vmatprep.subr.mxu0 0.0
        %380 = vmatpush1.msra.mxu0 0.0
        %381 = vmatprep.subr.mxu0 0.0
        %382 = vmatpush1.msra.mxu0 0.0
        %383 = vmatprep.subr.mxu0 0.0
        %384 = vmatpush1.msra.mxu0 0.0
        %385 = vmatprep.subr.mxu0 0.0
        %386 = vmatpush1.msra.mxu0 0.0
        %387 = vmatprep.subr.mxu0 0.0
        %388 = vmatpush1.msra.mxu0 0.0
        %389 = vmatprep.subr.mxu0 0.0
        %390 = vmatpush1.msra.mxu0 0.0
        %391 = vmatprep.subr.mxu0 0.0
        %392 = vmatpush1.msra.mxu0 0.0
        %393 = vmatprep.subr.mxu0 0.0
        %394 = vmatpush1.msra.mxu0 0.0
        %395 = vmatprep.subr.mxu0 0.0
        %396 = vmatpush1.msra.mxu0 0.0
        %397 = vmatprep.subr.mxu0 0.0
        %398 = vmatpush1.msra.mxu0 0.0
        %399 = vmatprep.subr.mxu0 0.0
        %400 = vmatpush1.msra.mxu0 0.0
        %401 = vmatprep.subr.mxu0 0.0
        %402 = vmatpush1.msra.mxu0 0.0
        %403 = vmatprep.subr.mxu0 0.0
        %404 = vmatpush1.msra.mxu0 0.0
        %405 = vmatprep.mubr.f32.mxu0 0.0
        %406 = vmatmul.mubr.f32.gmra.mrb[0].mxu0 %v339
        %v407 = vpop.f32.mrb[0].mxu0
        %v408 = vadd.f32 %v335, %v407
        %v409 = vpop.f32.mrb[0].mxu0
        %410 = vdwg.mxu0
        %v411 = vmax.f32 %v408, 0.0
        %v412 = vld [vmem:[%s3] sm:$0xff]
        %v413 = vld [vmem:[%s3 + $0x8] sm:$0xff]
        %v414 = vld [vmem:[%s3 + $0x10] sm:$0xff]
        %v415 = vld [vmem:[%s3 + $0x18] sm:$0xff]
        %v416 = vld [vmem:[%s4] sm:$0x1]
        %v418 = vlaneseq
        %v419 = vshrl.u32 %v418, 7
        %v420 = vsub.s32 0, %v419
        %v421 = vrot.slane %v416, %v420
        %vm423 = vcmask 261120
        %v425 = vsel %vm423, %v411, 0
        %427 = vmatprep.subr.mxu0 0.0
        %428 = vmatpush1.msra.mxu0 %v412
        %429 = vmatprep.subr.mxu0 0.0
        %430 = vmatpush1.msra.mxu0 %v413
        %431 = vmatprep.subr.mxu0 0.0
        %432 = vmatpush1.msra.mxu0 %v414
        %433 = vmatprep.subr.mxu0 0.0
        %434 = vmatpush1.msra.mxu0 %v415
        %435 = vmatprep.subr.mxu0 0.0
        %436 = vmatpush1.msra.mxu0 0.0
        %437 = vmatprep.subr.mxu0 0.0
        %438 = vmatpush1.msra.mxu0 0.0
        %439 = vmatprep.subr.mxu0 0.0
        %440 = vmatpush1.msra.mxu0 0.0
        %441 = vmatprep.subr.mxu0 0.0
        %442 = vmatpush1.msra.mxu0 0.0
        %443 = vmatprep.subr.mxu0 0.0
        %444 = vmatpush1.msra.mxu0 0.0
        %445 = vmatprep.subr.mxu0 0.0
        %446 = vmatpush1.msra.mxu0 0.0
        %447 = vmatprep.subr.mxu0 0.0
        %448 = vmatpush1.msra.mxu0 0.0
        %449 = vmatprep.subr.mxu0 0.0
        %450 = vmatpush1.msra.mxu0 0.0
        %451 = vmatprep.subr.mxu0 0.0
        %452 = vmatpush1.msra.mxu0 0.0
        %453 = vmatprep.subr.mxu0 0.0
        %454 = vmatpush1.msra.mxu0 0.0
        %455 = vmatprep.subr.mxu0 0.0
        %456 = vmatpush1.msra.mxu0 0.0
        %457 = vmatprep.subr.mxu0 0.0
        %458 = vmatpush1.msra.mxu0 0.0
        %459 = vmatprep.subr.mxu0 0.0
        %460 = vmatpush1.msra.mxu0 0.0
        %461 = vmatprep.subr.mxu0 0.0
        %462 = vmatpush1.msra.mxu0 0.0
        %463 = vmatprep.subr.mxu0 0.0
        %464 = vmatpush1.msra.mxu0 0.0
        %465 = vmatprep.subr.mxu0 0.0
        %466 = vmatpush1.msra.mxu0 0.0
        %467 = vmatprep.subr.mxu0 0.0
        %468 = vmatpush1.msra.mxu0 0.0
        %469 = vmatprep.subr.mxu0 0.0
        %470 = vmatpush1.msra.mxu0 0.0
        %471 = vmatprep.subr.mxu0 0.0
        %472 = vmatpush1.msra.mxu0 0.0
        %473 = vmatprep.subr.mxu0 0.0
        %474 = vmatpush1.msra.mxu0 0.0
        %475 = vmatprep.subr.mxu0 0.0
        %476 = vmatpush1.msra.mxu0 0.0
        %477 = vmatprep.subr.mxu0 0.0
        %478 = vmatpush1.msra.mxu0 0.0
        %479 = vmatprep.subr.mxu0 0.0
        %480 = vmatpush1.msra.mxu0 0.0
        %481 = vmatprep.subr.mxu0 0.0
        %482 = vmatpush1.msra.mxu0 0.0
        %483 = vmatprep.subr.mxu0 0.0
        %484 = vmatpush1.msra.mxu0 0.0
        %485 = vmatprep.subr.mxu0 0.0
        %486 = vmatpush1.msra.mxu0 0.0
        %487 = vmatprep.subr.mxu0 0.0
        %488 = vmatpush1.msra.mxu0 0.0
        %489 = vmatprep.subr.mxu0 0.0
        %490 = vmatpush1.msra.mxu0 0.0
        %491 = vmatprep.mubr.f32.mxu0 0.0
        %492 = vmatmul.mubr.f32.gmra.mrb[0].mxu0 %v425
        %v493 = vpop.f32.mrb[0].mxu0
        %v494 = vadd.f32 %v421, %v493
        %v495 = vpop.f32.mrb[0].mxu0
        %496 = vdwg.mxu0
        %v497 = vtanh.pop %v494
        %v498 = vld [vmem:[%s5] sm:$0xff]
        %v499 = vld [vmem:[%s5 + $0x8] sm:$0xff]
        %v500 = vld [vmem:[%s5 + $0x10] sm:$0xff]
        %v501 = vld [vmem:[%s5 + $0x18] sm:$0xff]
        %v502 = vld [vmem:[%s6] sm:$0x1]
        %v504 = vlaneseq
        %v505 = vshrl.u32 %v504, 7
        %v506 = vsub.s32 0, %v505
        %v507 = vrot.slane %v502, %v506
        %v510 = vsel %vm423, %v497, 0
        %512 = vmatprep.subr.mxu0 0.0
        %513 = vmatpush1.msra.mxu0 %v498
        %514 = vmatprep.subr.mxu0 0.0
        %515 = vmatpush1.msra.mxu0 %v499
        %516 = vmatprep.subr.mxu0 0.0
        %517 = vmatpush1.msra.mxu0 %v500
        %518 = vmatprep.subr.mxu0 0.0
        %519 = vmatpush1.msra.mxu0 %v501
        %520 = vmatprep.subr.mxu0 0.0
        %521 = vmatpush1.msra.mxu0 0.0
        %522 = vmatprep.subr.mxu0 0.0
        %523 = vmatpush1.msra.mxu0 0.0
        %524 = vmatprep.subr.mxu0 0.0
        %525 = vmatpush1.msra.mxu0 0.0
        %526 = vmatprep.subr.mxu0 0.0
        %527 = vmatpush1.msra.mxu0 0.0
        %528 = vmatprep.subr.mxu0 0.0
        %529 = vmatpush1.msra.mxu0 0.0
        %530 = vmatprep.subr.mxu0 0.0
        %531 = vmatpush1.msra.mxu0 0.0
        %532 = vmatprep.subr.mxu0 0.0
        %533 = vmatpush1.msra.mxu0 0.0
        %534 = vmatprep.subr.mxu0 0.0
        %535 = vmatpush1.msra.mxu0 0.0
        %536 = vmatprep.subr.mxu0 0.0
        %537 = vmatpush1.msra.mxu0 0.0
        %538 = vmatprep.subr.mxu0 0.0
        %539 = vmatpush1.msra.mxu0 0.0
        %540 = vmatprep.subr.mxu0 0.0
        %541 = vmatpush1.msra.mxu0 0.0
        %542 = vmatprep.subr.mxu0 0.0
        %543 = vmatpush1.msra.mxu0 0.0
        %544 = vmatprep.subr.mxu0 0.0
        %545 = vmatpush1.msra.mxu0 0.0
        %546 = vmatprep.subr.mxu0 0.0
        %547 = vmatpush1.msra.mxu0 0.0
        %548 = vmatprep.subr.mxu0 0.0
        %549 = vmatpush1.msra.mxu0 0.0
        %550 = vmatprep.subr.mxu0 0.0
        %551 = vmatpush1.msra.mxu0 0.0
        %552 = vmatprep.subr.mxu0 0.0
        %553 = vmatpush1.msra.mxu0 0.0
        %554 = vmatprep.subr.mxu0 0.0
        %555 = vmatpush1.msra.mxu0 0.0
        %556 = vmatprep.subr.mxu0 0.0
        %557 = vmatpush1.msra.mxu0 0.0
        %558 = vmatprep.subr.mxu0 0.0
        %559 = vmatpush1.msra.mxu0 0.0
        %560 = vmatprep.subr.mxu0 0.0
        %561 = vmatpush1.msra.mxu0 0.0
        %562 = vmatprep.subr.mxu0 0.0
        %563 = vmatpush1.msra.mxu0 0.0
        %564 = vmatprep.subr.mxu0 0.0
        %565 = vmatpush1.msra.mxu0 0.0
        %566 = vmatprep.subr.mxu0 0.0
        %567 = vmatpush1.msra.mxu0 0.0
        %568 = vmatprep.subr.mxu0 0.0
        %569 = vmatpush1.msra.mxu0 0.0
        %570 = vmatprep.subr.mxu0 0.0
        %571 = vmatpush1.msra.mxu0 0.0
        %572 = vmatprep.subr.mxu0 0.0
        %573 = vmatpush1.msra.mxu0 0.0
        %574 = vmatprep.subr.mxu0 0.0
        %575 = vmatpush1.msra.mxu0 0.0
        %576 = vmatprep.mubr.f32.mxu0 0.0
        %577 = vmatmul.mubr.f32.gmra.mrb[0].mxu0 %v510
        %v578 = vpop.f32.mrb[0].mxu0
        %v579 = vadd.f32 %v507, %v578
        %v580 = vpop.f32.mrb[0].mxu0
        %581 = vdwg.mxu0
        %vm582 = vcmask 64512
        %583 = vst.msk [vmem:[%s322] sm:$0xff] %vm582, %v579
        %v584 = vand.u32 2147483647, %v579
        %v585 = vsub.f32 0.0, %v584
        %v586 = vmul.f32 %v585, 1.442695
        %v587 = vpow.pop %v586
        %v588 = vadd.f32 %v587, 1.0
        %v589 = vlog2.pop %v588
        %v590 = vmul.f32 %v589, 0.6931472
        %v591 = vmul.f32 -0.5, %v587
        %v592 = vadd.f32 %v591, 1.0
        %v593 = vmul.f32 %v592, %v587
        %v594 = vand.u32 2147483647, %v587
        %vm595 = vcmp.lt.f32.partialorder %v594, 0.0004427343
        %v596 = vsel %vm595, %v593, %v590
        %v597 = vmax.f32 %v579, 0.0
        %v598 = vadd.f32 %v596, %v597
        %600 = vrot.lane.b32.xlu0 %v598, 120
        %v601 = vpop.permute.xlu0 %600
        %603 = vst.msk [vmem:[%s326] sm:$0xff] %vm582, %v601
        %p604 = scmp.lt.s32.totalorder %s21, 1
        %s605 = scalar_select %p604, %s21, 1
        %s606 = smul.addr %s605, 8
        %s607 = scalar_lea.vmem %s7, %s606
        %p608 = scmp.lt.s32.totalorder %s21, 1
        %s609 = scalar_select %p608, %s21, 1
        %s610 = smul.addr %s609, 8
        %s611 = scalar_lea.vmem %s8, %s610
        // Predicated region
        $region53: #{tpu_custom_call.1} parent=47 // pred_check
          %p612 = pneg %p191
        $region54: #{tpu_custom_call.1} parent=47 // pred_check_branch
          %614 = sbr.rel (%p612) target = $region56
        $region55: #{tpu_custom_call.1} parent=47 // pred_region
          _
        $region56: #{tpu_custom_call.1} parent=47 // pred_fallthru
          _
        // Predicated region
        $region57: #{tpu_custom_call.1} parent=47 // pred_check
          %p615 = pneg %p217
        $region58: #{tpu_custom_call.1} parent=47 // pred_check_branch
          %617 = sbr.rel (%p615) target = $region60
        $region59: #{tpu_custom_call.1} parent=47 // pred_region
          _
        $region60: #{tpu_custom_call.1} parent=47 // pred_fallthru
          _
      $region48: #{tpu_custom_call.1} parent=5 // pred_fallthru
        _
      %p618 = scmp.le.s32.totalorder 2, %s16
      // Predicated region
      $region61: #{tpu_custom_call.1} parent=5 // pred_check
        %p619 = pneg %p618
      $region62: #{tpu_custom_call.1} parent=5 // pred_check_branch
        %621 = sbr.rel (%p619) target = $region64
      $region63: #{tpu_custom_call.1} parent=5 // pred_region
        %s622 = ssub.s32 %s16, 2
        // Predicated region
        $region65: #{tpu_custom_call.1} parent=63 // pred_check
          %p623 = pneg %p197
        $region66: #{tpu_custom_call.1} parent=63 // pred_check_branch
          %625 = sbr.rel (%p623) target = $region68
        $region67: #{tpu_custom_call.1} parent=63 // pred_region
          %p626 = scmp.lt.s32.totalorder %s22, 1
          %s627 = scalar_select %p626, %s22, 1
          %s628 = smul.addr %s627, 8
          %s629 = scalar_lea.vmem %s7, %s628
        $region68: #{tpu_custom_call.1} parent=63 // pred_fallthru
          _
        // Predicated region
        $region69: #{tpu_custom_call.1} parent=63 // pred_check
          %p630 = pneg %p223
        $region70: #{tpu_custom_call.1} parent=63 // pred_check_branch
          %632 = sbr.rel (%p630) target = $region72
        $region71: #{tpu_custom_call.1} parent=63 // pred_region
          %p633 = scmp.lt.s32.totalorder %s22, 1
          %s634 = scalar_select %p633, %s22, 1
          %s635 = smul.addr %s634, 8
          %s636 = scalar_lea.vmem %s8, %s635
        $region72: #{tpu_custom_call.1} parent=63 // pred_fallthru
          _
      $region64: #{tpu_custom_call.1} parent=5 // pred_fallthru
        _
    $region6: #{tpu_custom_call.1} parent=1 // loop_footer
      %s20 = sadd.s32 1, %s16
    $region7: #{tpu_custom_call.1} parent=1 // loop_footer_branch
      %15 = sbr.rel target = $region3
    $region8: #{tpu_custom_call.1} parent=1 // loop_exit
      _
    %637 = vsyncpa [#allocation3], 1
    %s638 = scalar_lea.sflag [#allocation3], 1
    %639 = vsyncpa %s638, 1

</llo_original>
